<compile_context>
chip_gen: v6e
topology: v6e:2x2x1
jax: 0.10.0
libtpu: 0.0.40
codegen_flags: <defaults>
</compile_context>

<pallas_src>
import functools

import jax
import jax.numpy as jnp
from jax.experimental import pallas as pl
from jax.experimental.pallas import tpu as pltpu


# ---------------------------------------------------------------------------
# Kernel
# ---------------------------------------------------------------------------
def _evaluate_kernel(x_ref, w1_ref, b1_ref, w2_ref, b2_ref, out_ref,
                     *, n_actions):
    x = x_ref[...]                                                   # [TB, D]

    # ---- fused first layer (actor ++ critic) ------------------------------
    h = jnp.dot(x, w1_ref[...], preferred_element_type=jnp.float32)  # [TB, 2H]
    h = jnp.maximum(h + b1_ref[...], 0.0)                            # f32 ReLU

    # ---- fused heads: block-diagonal [2H, A+1] -> [logits | value] --------
    h_mm = h.astype(w2_ref.dtype)
    y = jnp.dot(h_mm, w2_ref[...],
                preferred_element_type=jnp.float32) + b2_ref[...]    # [TB, A+1]

    logits = y[:, :n_actions]                                        # [TB, A]
    value = y[:, n_actions:n_actions + 1]                            # [TB, 1]

    # ---- softmax + Categorical entropy (f32) ------------------------------
    m = jnp.max(logits, axis=-1, keepdims=True)
    e = jnp.exp(logits - m)
    s = jnp.sum(e, axis=-1, keepdims=True)
    probs = e / s
    logp = (logits - m) - jnp.log(s)
    ent = -jnp.sum(probs * logp, axis=-1, keepdims=True)             # [TB, 1]

    # ---- single lane-dense store: [probs | value | ent | zero-pad] --------
    tb, out_w = out_ref.shape
    pad = jnp.zeros((tb, out_w - (n_actions + 2)), jnp.float32)
    out_ref[...] = jnp.concatenate([probs, value, ent, pad], axis=-1)


# ---------------------------------------------------------------------------
# Wrapper
# ---------------------------------------------------------------------------
def actor_critic_evaluate(states, params, *, tb=128, matmul_dtype=jnp.float32):
    """Pallas fused version of ActorCritic.evaluate(states).

    Returns (probs [B, A], state_values [B, 1], entropy [B, 1]).
    """
    w1a, b1a, w2a, b2a, w1c, b1c, w2c, b2c = params
    B = states.shape[0]
    x = states.reshape(B, -1).astype(jnp.float32)                    # [B, D]
    D = x.shape[1]
    H = w1a.shape[1]
    A = w2a.shape[1]
    OUT = 128                     # lane-dense output slab width

    assert tb % 8 == 0, "batch tile must be a multiple of 8 (sublane)"

    # ---- pack weights -------------------------------------------------------
    # First layer: [D, 2H] (actor cols 0..H-1, critic cols H..2H-1).
    w1 = jnp.concatenate([w1a, w1c], axis=1)
    b1 = jnp.concatenate([b1a, b1c], axis=1)                         # [1, 2H]
    # Heads: block-diagonal [2H, A+1] -> one matmul gives [logits | value].
    w2 = jnp.zeros((2 * H, A + 1), jnp.float32)
    w2 = w2.at[:H, :A].set(w2a)
    w2 = w2.at[H:, A:].set(w2c)
    b2 = jnp.concatenate([b2a, b2c], axis=1)                         # [1, A+1]

    # Narrow dtype feeds the MXU only; biases / epilogue stay f32.
    x_mm = x.astype(matmul_dtype)
    w1_mm = w1.astype(matmul_dtype)
    w2_mm = w2.astype(matmul_dtype)

    # ---- batch tiling / padding --------------------------------------------
    tb = min(tb, ((B + 7) // 8) * 8)
    bp = pl.cdiv(B, tb) * tb
    if bp != B:
        x_mm = jnp.pad(x_mm, ((0, bp - B), (0, 0)))
    grid = (bp // tb,)

    # ---- explicit VMEM budget (fits v7x's 64 MiB physical / 32 MiB scoped) --
    itm = jnp.dtype(matmul_dtype).itemsize
    need = (2 * tb * D * itm                  # x, double-buffered
            + 2 * tb * OUT * 4                # output slab, double-buffered
            + (D * 2 * H + 2 * H * (A + 1)) * itm   # resident weights
            + (2 * H + (A + 1)) * 4)          # resident biases
    vmem_limit = int(min(max(4 * need, 8 << 20), 32 << 20))

    const = lambda shp: pl.BlockSpec(shp, lambda i: (0, 0))

    kernel = functools.partial(_evaluate_kernel, n_actions=A)

    out = pl.pallas_call(
        kernel,
        out_shape=jax.ShapeDtypeStruct((bp, OUT), jnp.float32),
        grid=grid,
        in_specs=[
            pl.BlockSpec((tb, D), lambda i: (i, 0)),                 # x: tiled
            const((D, 2 * H)), const((1, 2 * H)),                    # resident
            const((2 * H, A + 1)), const((1, A + 1)),                # resident
        ],
        out_specs=pl.BlockSpec((tb, OUT), lambda i: (i, 0)),
        compiler_params=pltpu.CompilerParams(
            dimension_semantics=("parallel",),                       # megacore on v7x
            vmem_limit_bytes=vmem_limit),
    )(x_mm, w1_mm, b1, w2_mm, b2)

    probs = out[:B, :A]
    value = out[:B, A:A + 1]
    ent = out[:B, A + 1:A + 2]
    return probs, value, ent


# ---------------------------------------------------------------------------
# Plain-JAX reference (for verification)
# ---------------------------------------------------------------------------
def _evaluate_reference(states, params):
    w1a, b1a, w2a, b2a, w1c, b1c, w2c, b2c = params
    B = states.shape[0]
    x = states.reshape(B, -1).astype(jnp.float32)
    h_a = jnp.maximum(x @ w1a + b1a, 0.0)
    logits = h_a @ w2a + b2a
    probs = jax.nn.softmax(logits, axis=-1)
    logp = jax.nn.log_softmax(logits, axis=-1)
    ent = -jnp.sum(probs * logp, axis=-1, keepdims=True)
    h_c = jnp.maximum(x @ w1c + b1c, 0.0)
    value = h_c @ w2c + b2c
    return probs, value, ent


def init_params(key, in_dim, hidden, n_actions):
    """Deterministic PyTorch-style (uniform +-1/sqrt(fan_in)) init."""
    ks = jax.random.split(key, 8)

    def lin(kw, kb, fan_in, fan_out):
        bound = 1.0 / jnp.sqrt(jnp.float32(fan_in))
        w = jax.random.uniform(kw, (fan_in, fan_out), jnp.float32, -bound, bound)
        b = jax.random.uniform(kb, (1, fan_out), jnp.float32, -bound, bound)
        return w, b

    w1a, b1a = lin(ks[0], ks[1], in_dim, hidden)
    w2a, b2a = lin(ks[2], ks[3], hidden, n_actions)
    w1c, b1c = lin(ks[4], ks[5], in_dim, hidden)
    w2c, b2c = lin(ks[6], ks[7], hidden, 1)
    return (w1a, b1a, w2a, b2a, w1c, b1c, w2c, b2c)


# TODO(synk): ActorCritic.act() additionally draws a Categorical sample
# (dist.sample()); stochastic sampling is left to the JAX side
# (jax.random.categorical on the returned probs) rather than faked in-kernel.

if __name__ == "__main__":
    key = jax.random.PRNGKey(0)
    k_state, k_param = jax.random.split(key)

    # batch of 256 states, each an 8x16 feature window -> D = 128 (lane-aligned)
    B, Hs, Ws = 256, 8, 16
    hidden, n_actions = 64, 3
    D = Hs * Ws

    states = jax.random.normal(k_state, (B, Hs, Ws), jnp.float32)
    params = init_params(k_param, D, hidden, n_actions)

    probs_r, value_r, ent_r = _evaluate_reference(states, params)

    # ---- f32 matmul path: tight check vs reference -------------------------
    probs, value, ent = actor_critic_evaluate(
        states, params, tb=128, matmul_dtype=jnp.float32)
    jax.block_until_ready((probs, value, ent))
    assert jnp.allclose(probs, probs_r, atol=1e-4, rtol=1e-4)
    assert jnp.allclose(value, value_r, atol=1e-4, rtol=1e-4)
    assert jnp.allclose(ent, ent_r, atol=1e-4, rtol=1e-4)
    assert jnp.allclose(jnp.sum(probs, axis=-1), 1.0, atol=1e-5)

    # ---- bf16 matmul path (halved DMA bytes): loose check -------------------
    probs_h, value_h, ent_h = actor_critic_evaluate(
        states, params, tb=128, matmul_dtype=jnp.bfloat16)
    jax.block_until_ready((probs_h, value_h, ent_h))
    assert jnp.allclose(probs_h, probs_r, atol=1e-1)
    assert jnp.allclose(value_h, value_r, atol=1e-1, rtol=1e-1)
    assert jnp.allclose(ent_h, ent_r, atol=1e-1)
    assert jnp.allclose(jnp.sum(probs_h, axis=-1), 1.0, atol=1e-2)

    print("KERNEL_OK")
</pallas_src>

<mosaic_0001>
module attributes {stable_mosaic.version = 11 : i64} {
  func.func @_evaluate_kernel(%arg0: i32, %arg1: memref<128x128xf32, #tpu.memory_space<vmem>>, %arg2: memref<128x128xf32, #tpu.memory_space<vmem>>, %arg3: memref<1x128xf32, #tpu.memory_space<vmem>>, %arg4: memref<128x4xf32, #tpu.memory_space<vmem>>, %arg5: memref<1x4xf32, #tpu.memory_space<vmem>>, %arg6: memref<128x128xf32, #tpu.memory_space<vmem>>) attributes {dimension_semantics = [#tpu.dimension_semantics<parallel>], iteration_bounds = array<i64: 2>, scalar_prefetch = 0 : i64, scratch_operands = 0 : i64, tpu.core_type = #tpu.core_type<tc>, window_params = [{transform_indices = @transform_0, window_bounds = array<i64: 128, 128>}, {pipeline_mode = #tpu.pipeline_mode<synchronous>, transform_indices = @transform_1, window_bounds = array<i64: 128, 128>}, {pipeline_mode = #tpu.pipeline_mode<synchronous>, transform_indices = @transform_2, window_bounds = array<i64: 1, 128>}, {pipeline_mode = #tpu.pipeline_mode<synchronous>, transform_indices = @transform_3, window_bounds = array<i64: 128, 4>}, {pipeline_mode = #tpu.pipeline_mode<synchronous>, transform_indices = @transform_4, window_bounds = array<i64: 1, 4>}, {transform_indices = @transform_5, window_bounds = array<i64: 128, 128>}]} {
    %c0 = arith.constant 0 : index
    %c0_0 = arith.constant 0 : index
    %0 = vector.load %arg1[%c0, %c0_0] : memref<128x128xf32, #tpu.memory_space<vmem>>, vector<128x128xf32>
    %c0_1 = arith.constant 0 : index
    %c0_2 = arith.constant 0 : index
    %1 = vector.load %arg2[%c0_1, %c0_2] : memref<128x128xf32, #tpu.memory_space<vmem>>, vector<128x128xf32>
    %cst = arith.constant dense<0.000000e+00> : vector<128x128xf32>
    %2 = tpu.matmul %0, %1, %cst {dimension_numbers = #tpu.dot_dimension_numbers<[1], [0], [0], [1], [0, 0, 1, 1], [], []>} : vector<128x128xf32>, vector<128x128xf32>, vector<128x128xf32> -> vector<128x128xf32>
    %c0_3 = arith.constant 0 : index
    %c0_4 = arith.constant 0 : index
    %3 = vector.load %arg3[%c0_3, %c0_4] : memref<1x128xf32, #tpu.memory_space<vmem>>, vector<1x128xf32>
    %4 = vector.broadcast %3 : vector<1x128xf32> to vector<128x128xf32>
    %5 = arith.addf %2, %4 : vector<128x128xf32>
    %cst_5 = arith.constant 0.000000e+00 : f32
    %6 = vector.broadcast %cst_5 : f32 to vector<128x128xf32>
    %7 = arith.maximumf %5, %6 : vector<128x128xf32>
    %c0_6 = arith.constant 0 : index
    %c0_7 = arith.constant 0 : index
    %8 = vector.load %arg4[%c0_6, %c0_7] : memref<128x4xf32, #tpu.memory_space<vmem>>, vector<128x4xf32>
    %cst_8 = arith.constant dense<0.000000e+00> : vector<128x4xf32>
    %9 = tpu.matmul %7, %8, %cst_8 {dimension_numbers = #tpu.dot_dimension_numbers<[1], [0], [0], [1], [0, 0, 1, 1], [], []>} : vector<128x128xf32>, vector<128x4xf32>, vector<128x4xf32> -> vector<128x4xf32>
    %c0_9 = arith.constant 0 : index
    %c0_10 = arith.constant 0 : index
    %10 = vector.load %arg5[%c0_9, %c0_10] : memref<1x4xf32, #tpu.memory_space<vmem>>, vector<1x4xf32>
    %11 = vector.broadcast %10 : vector<1x4xf32> to vector<128x4xf32>
    %12 = arith.addf %9, %11 : vector<128x4xf32>
    %13 = vector.extract_strided_slice %12 {offsets = [0, 0], sizes = [128, 3], strides = [1, 1]} : vector<128x4xf32> to vector<128x3xf32>
    %14 = vector.extract_strided_slice %12 {offsets = [0, 3], sizes = [128, 1], strides = [1, 1]} : vector<128x4xf32> to vector<128x1xf32>
    %cst_11 = arith.constant dense<0xFF800000> : vector<128xf32>
    %15 = vector.multi_reduction <maximumf>, %13, %cst_11 [1] : vector<128x3xf32> to vector<128xf32>
    %16 = vector.shape_cast %15 : vector<128xf32> to vector<128x1xf32>
    %17 = vector.broadcast %16 : vector<128x1xf32> to vector<128x3xf32>
    %18 = arith.subf %13, %17 : vector<128x3xf32>
    %19 = math.exp %18 : vector<128x3xf32>
    %cst_12 = arith.constant dense<0.000000e+00> : vector<128xf32>
    %20 = vector.multi_reduction <add>, %19, %cst_12 [1] : vector<128x3xf32> to vector<128xf32>
    %21 = vector.shape_cast %20 : vector<128xf32> to vector<128x1xf32>
    %22 = vector.broadcast %21 : vector<128x1xf32> to vector<128x3xf32>
    %23 = arith.divf %19, %22 : vector<128x3xf32>
    %24 = vector.broadcast %16 : vector<128x1xf32> to vector<128x3xf32>
    %25 = arith.subf %13, %24 : vector<128x3xf32>
    %26 = math.log %21 : vector<128x1xf32>
    %27 = vector.broadcast %26 : vector<128x1xf32> to vector<128x3xf32>
    %28 = arith.subf %25, %27 : vector<128x3xf32>
    %29 = arith.mulf %23, %28 : vector<128x3xf32>
    %cst_13 = arith.constant dense<0.000000e+00> : vector<128xf32>
    %30 = vector.multi_reduction <add>, %29, %cst_13 [1] : vector<128x3xf32> to vector<128xf32>
    %31 = vector.shape_cast %30 : vector<128xf32> to vector<128x1xf32>
    %cst_14 = arith.constant 0.000000e+00 : f32
    %32 = vector.broadcast %cst_14 : f32 to vector<128x1xf32>
    %33 = arith.subf %32, %31 : vector<128x1xf32>
    %cst_15 = arith.constant 0.000000e+00 : f32
    %34 = vector.broadcast %cst_15 : f32 to vector<128x123xf32>
    %35 = tpu.concatenate %23, %14, %33, %34 in 1 : vector<128x3xf32>, vector<128x1xf32>, vector<128x1xf32>, vector<128x123xf32> -> vector<128x128xf32>
    %c0_16 = arith.constant 0 : index
    %c0_17 = arith.constant 0 : index
    %36 = vector.load %arg6[%c0_16, %c0_17] : memref<128x128xf32, #tpu.memory_space<vmem>>, vector<128x128xf32>
    tpu.vector_store %arg6[%c0_16, %c0_17], %35 {strides = array<i32>} : memref<128x128xf32, #tpu.memory_space<vmem>>, vector<128x128xf32>,
    return
  }
  func.func @transform_0(%arg0: i32) -> (i32, i32) {
    %c0_i32 = arith.constant 0 : i32
    %c0_i32_0 = arith.constant 0 : i32
    return %arg0, %c0_i32 : i32, i32
  }
  func.func @transform_1(%arg0: i32) -> (i32, i32) {
    %c0_i32 = arith.constant 0 : i32
    %c0_i32_0 = arith.constant 0 : i32
    %c0_i32_1 = arith.constant 0 : i32
    return %c0_i32, %c0_i32_0 : i32, i32
  }
  func.func @transform_2(%arg0: i32) -> (i32, i32) {
    %c0_i32 = arith.constant 0 : i32
    %c0_i32_0 = arith.constant 0 : i32
    %c0_i32_1 = arith.constant 0 : i32
    return %c0_i32, %c0_i32_0 : i32, i32
  }
  func.func @transform_3(%arg0: i32) -> (i32, i32) {
    %c0_i32 = arith.constant 0 : i32
    %c0_i32_0 = arith.constant 0 : i32
    %c0_i32_1 = arith.constant 0 : i32
    return %c0_i32, %c0_i32_0 : i32, i32
  }
  func.func @transform_4(%arg0: i32) -> (i32, i32) {
    %c0_i32 = arith.constant 0 : i32
    %c0_i32_0 = arith.constant 0 : i32
    %c0_i32_1 = arith.constant 0 : i32
    return %c0_i32, %c0_i32_0 : i32, i32
  }
  func.func @transform_5(%arg0: i32) -> (i32, i32) {
    %c0_i32 = arith.constant 0 : i32
    %c0_i32_0 = arith.constant 0 : i32
    return %arg0, %c0_i32 : i32, i32
  }
}

</mosaic_0001>

<llo_original>
// kernel: tpu_custom_call.1
$region0: #{tpu_custom_call.1}
  #allocation0 [shape = 'u32[]', space=smem, size = 0x4, offset = 0x4, fixed_abs, tag = 'smem constant byte address 0x4 - core index']
  #allocation1 [shape = 'u32[144,128]{1,0:T(1,128)}', space=vmem, size = 0x12000, scoped, tag = 'internal scratch']
  %s0 = inlined_call_operand.hbm [shape: f32[256,128], index: 0, kind: input, shape index: {}]
  %s1 = inlined_call_operand.vmem [shape: f32[128,128], index: 1, kind: input, shape index: {}]
  %s2 = inlined_call_operand.vmem [shape: f32[1,128], index: 2, kind: input, shape index: {}]
  %s3 = inlined_call_operand.vmem [shape: f32[128,4], index: 3, kind: input, shape index: {}]
  %s4 = inlined_call_operand.vmem [shape: f32[1,4], index: 4, kind: input, shape index: {}]
  %s5 = inlined_call_operand.hbm [shape: f32[256,128], index: 5, kind: output, shape index: {}]
  %s6 = sld [smem:[#allocation0]]
  $region57: #{tpu_custom_call.1} parent=0
    _
  %s8 = ssub.s32 1, %s6
  %s9 = scalar_select 0, %s8, %s6
  $region1: #{tpu_custom_call.1} parent=0
    #allocation2 [shape = 'u8[131072]{0}', space=vmem, size = 0x20000, scoped, tag = 'input window, operand 0']
    #allocation3 [shape = 's32[2]{0}', space=sflag, size = 0x8, scoped, tag = 'scoped memory for tpu_custom_call.1']
    #allocation4 [shape = 's32[2]{0}', space=sflag, size = 0x8, scoped, tag = 'scoped memory for tpu_custom_call.1']
    #allocation5 [shape = 'u8[131072]{0}', space=vmem, size = 0x20000, scoped, tag = 'output window, operand 0']
    %10 = vsyncpa [#allocation3], 0
    %s11 = scalar_lea.sflag [#allocation3], 1
    %12 = vsyncpa %s11, 0
    %13 = vsyncpa [#allocation4], 0
    %s14 = scalar_lea.sflag [#allocation4], 1
    %15 = vsyncpa %s14, 0
    loop: start=0, step=1, limit=4
    $region2: #{tpu_custom_call.1} parent=1 // loop_pre_header
      _
    $region3: #{tpu_custom_call.1} parent=1 // loop_header
      %s17 = sphi 0, %s21
      %p18 = scmp.ge.s32.totalorder %s17, 4
      %s27 = sphi 0, %s29
      %s30 = sphi 0, %s27
      %s31 = sphi 0, %s30
      %s47 = sphi 0, %s31
      %s51 = sphi 0, %s51
      %s53 = sphi 0, %s51
      %s54 = sphi 0, %s53
      %s68 = sphi 0, %s54
      %s72 = sphi 0, %s72
      %s74 = sphi 0, %s72
      %s75 = sphi 0, %s74
      %s89 = sphi 0, %s75
      %s93 = sphi 0, %s93
      %s95 = sphi 0, %s93
      %s96 = sphi 0, %s95
      %s110 = sphi 0, %s96
      %s114 = sphi 0, %s114
      %s116 = sphi 0, %s114
      %s117 = sphi 0, %s116
      %s131 = sphi 0, %s117
      %s137 = sphi 0, %s139
      %s140 = sphi 0, %s137
      %s141 = sphi 0, %s140
      %s157 = sphi 0, %s141
    $region4: #{tpu_custom_call.1} parent=1 // loop_header_branch
      %20 = sbr.rel (%p18) target = $region8
    $region5: #{tpu_custom_call.1} parent=1 // loop_body
      %s22 = ssub.s32 %s17, 1
      %s23 = ssub.s32 %s17, 2
      %s24 = sadd.s32 %s17, 1
      %s25 = ssub.s32 %s17, %s24
      %p26 = scmp.eq.s32.totalorder %s25, 0
      %s28 = sadd.s32 %s27, 1
      %s29 = scalar_select %p26, %s27, %s28
      %p32 = pneg %p26
      %p33 = scmp.eq.s32.totalorder %s17, 1
      %p34 = por %p32, %p33
      %p35 = scmp.ne.s32.totalorder %s27, %s30
      %p36 = scmp.eq.s32.totalorder %s17, 0
      %p37 = por %p35, %p36
      %p38 = scmp.ne.s32.totalorder %s27, %s30
      %p39 = scmp.eq.s32.totalorder %s22, 1
      %p40 = por %p38, %p39
      %p41 = scmp.ne.s32.totalorder %s30, %s31
      %p42 = scmp.eq.s32.totalorder %s22, 0
      %p43 = por %p41, %p42
      %p44 = scmp.ne.s32.totalorder %s30, %s31
      %p45 = scmp.eq.s32.totalorder %s23, 1
      %p46 = por %p44, %p45
      %p48 = scmp.ne.s32.totalorder %s31, %s47
      %p49 = scmp.eq.s32.totalorder %s23, 0
      %p50 = por %p48, %p49
      %s52 = sadd.s32 %s51, 1
      %p55 = scmp.eq.s32.totalorder %s17, 1
      %p56 = scmp.ne.s32.totalorder %s51, %s53
      %p57 = scmp.eq.s32.totalorder %s17, 0
      %p58 = por %p56, %p57
      %p59 = scmp.ne.s32.totalorder %s51, %s53
      %p60 = scmp.eq.s32.totalorder %s22, 1
      %p61 = por %p59, %p60
      %p62 = scmp.ne.s32.totalorder %s53, %s54
      %p63 = scmp.eq.s32.totalorder %s22, 0
      %p64 = por %p62, %p63
      %p65 = scmp.ne.s32.totalorder %s53, %s54
      %p66 = scmp.eq.s32.totalorder %s23, 1
      %p67 = por %p65, %p66
      %p69 = scmp.ne.s32.totalorder %s54, %s68
      %p70 = scmp.eq.s32.totalorder %s23, 0
      %p71 = por %p69, %p70
      %s73 = sadd.s32 %s72, 1
      %p76 = scmp.eq.s32.totalorder %s17, 1
      %p77 = scmp.ne.s32.totalorder %s72, %s74
      %p78 = scmp.eq.s32.totalorder %s17, 0
      %p79 = por %p77, %p78
      %p80 = scmp.ne.s32.totalorder %s72, %s74
      %p81 = scmp.eq.s32.totalorder %s22, 1
      %p82 = por %p80, %p81
      %p83 = scmp.ne.s32.totalorder %s74, %s75
      %p84 = scmp.eq.s32.totalorder %s22, 0
      %p85 = por %p83, %p84
      %p86 = scmp.ne.s32.totalorder %s74, %s75
      %p87 = scmp.eq.s32.totalorder %s23, 1
      %p88 = por %p86, %p87
      %p90 = scmp.ne.s32.totalorder %s75, %s89
      %p91 = scmp.eq.s32.totalorder %s23, 0
      %p92 = por %p90, %p91
      %s94 = sadd.s32 %s93, 1
      %p97 = scmp.eq.s32.totalorder %s17, 1
      %p98 = scmp.ne.s32.totalorder %s93, %s95
      %p99 = scmp.eq.s32.totalorder %s17, 0
      %p100 = por %p98, %p99
      %p101 = scmp.ne.s32.totalorder %s93, %s95
      %p102 = scmp.eq.s32.totalorder %s22, 1
      %p103 = por %p101, %p102
      %p104 = scmp.ne.s32.totalorder %s95, %s96
      %p105 = scmp.eq.s32.totalorder %s22, 0
      %p106 = por %p104, %p105
      %p107 = scmp.ne.s32.totalorder %s95, %s96
      %p108 = scmp.eq.s32.totalorder %s23, 1
      %p109 = por %p107, %p108
      %p111 = scmp.ne.s32.totalorder %s96, %s110
      %p112 = scmp.eq.s32.totalorder %s23, 0
      %p113 = por %p111, %p112
      %s115 = sadd.s32 %s114, 1
      %p118 = scmp.eq.s32.totalorder %s17, 1
      %p119 = scmp.ne.s32.totalorder %s114, %s116
      %p120 = scmp.eq.s32.totalorder %s17, 0
      %p121 = por %p119, %p120
      %p122 = scmp.ne.s32.totalorder %s114, %s116
      %p123 = scmp.eq.s32.totalorder %s22, 1
      %p124 = por %p122, %p123
      %p125 = scmp.ne.s32.totalorder %s116, %s117
      %p126 = scmp.eq.s32.totalorder %s22, 0
      %p127 = por %p125, %p126
      %p128 = scmp.ne.s32.totalorder %s116, %s117
      %p129 = scmp.eq.s32.totalorder %s23, 1
      %p130 = por %p128, %p129
      %p132 = scmp.ne.s32.totalorder %s117, %s131
      %p133 = scmp.eq.s32.totalorder %s23, 0
      %p134 = por %p132, %p133
      %s135 = ssub.s32 %s17, %s24
      %p136 = scmp.eq.s32.totalorder %s135, 0
      %s138 = sadd.s32 %s137, 1
      %s139 = scalar_select %p136, %s137, %s138
      %p142 = pneg %p136
      %p143 = scmp.eq.s32.totalorder %s17, 1
      %p144 = por %p142, %p143
      %p145 = scmp.ne.s32.totalorder %s137, %s140
      %p146 = scmp.eq.s32.totalorder %s17, 0
      %p147 = por %p145, %p146
      %p148 = scmp.ne.s32.totalorder %s137, %s140
      %p149 = scmp.eq.s32.totalorder %s22, 1
      %p150 = por %p148, %p149
      %p151 = scmp.ne.s32.totalorder %s140, %s141
      %p152 = scmp.eq.s32.totalorder %s22, 0
      %p153 = por %p151, %p152
      %p154 = scmp.ne.s32.totalorder %s140, %s141
      %p155 = scmp.eq.s32.totalorder %s23, 1
      %p156 = por %p154, %p155
      %p158 = scmp.ne.s32.totalorder %s141, %s157
      %p159 = scmp.eq.s32.totalorder %s23, 0
      %p160 = por %p158, %p159
      %p161 = scmp.le.s32.totalorder 1, %s17
      %p162 = scmp.lt.s32.totalorder %s17, 3
      %p163 = pnand %p161, %p162
      %p164 = pneg %p163
      // Predicated region
      $region9: #{tpu_custom_call.1} parent=5 // pred_check
        _
      $region10: #{tpu_custom_call.1} parent=5 // pred_check_branch
        %166 = sbr.rel (%p163) target = $region12
      $region11: #{tpu_custom_call.1} parent=5 // pred_region
        %s167 = ssub.s32 %s17, 1
        // Predicated region
        $region13: #{tpu_custom_call.1} parent=11 // pred_check
          %p168 = pneg %p64
        $region14: #{tpu_custom_call.1} parent=11 // pred_check_branch
          %170 = sbr.rel (%p168) target = $region16
        $region15: #{tpu_custom_call.1} parent=11 // pred_region
          _
        $region16: #{tpu_custom_call.1} parent=11 // pred_fallthru
          _
        // Predicated region
        $region17: #{tpu_custom_call.1} parent=11 // pred_check
          %p171 = pneg %p85
        $region18: #{tpu_custom_call.1} parent=11 // pred_check_branch
          %173 = sbr.rel (%p171) target = $region20
        $region19: #{tpu_custom_call.1} parent=11 // pred_region
          _
        $region20: #{tpu_custom_call.1} parent=11 // pred_fallthru
          _
        // Predicated region
        $region21: #{tpu_custom_call.1} parent=11 // pred_check
          %p174 = pneg %p106
        $region22: #{tpu_custom_call.1} parent=11 // pred_check_branch
          %176 = sbr.rel (%p174) target = $region24
        $region23: #{tpu_custom_call.1} parent=11 // pred_region
          _
        $region24: #{tpu_custom_call.1} parent=11 // pred_fallthru
          _
        // Predicated region
        $region25: #{tpu_custom_call.1} parent=11 // pred_check
          %p177 = pneg %p127
        $region26: #{tpu_custom_call.1} parent=11 // pred_check_branch
          %179 = sbr.rel (%p177) target = $region28
        $region27: #{tpu_custom_call.1} parent=11 // pred_region
          _
        $region28: #{tpu_custom_call.1} parent=11 // pred_fallthru
          _
      $region12: #{tpu_custom_call.1} parent=5 // pred_fallthru
        _
      %p180 = scmp.lt.s32.totalorder %s17, 2
      // Predicated region
      $region29: #{tpu_custom_call.1} parent=5 // pred_check
        %p181 = pneg %p180
      $region30: #{tpu_custom_call.1} parent=5 // pred_check_branch
        %183 = sbr.rel (%p181) target = $region32
      $region31: #{tpu_custom_call.1} parent=5 // pred_region
        // Predicated region
        $region33: #{tpu_custom_call.1} parent=31 // pred_check
          %p184 = pneg %p37
        $region34: #{tpu_custom_call.1} parent=31 // pred_check_branch
          %186 = sbr.rel (%p184) target = $region36
        $region35: #{tpu_custom_call.1} parent=31 // pred_region
          %s187 = sand.u32 %s27, 1
          %s188 = scalar_lea.sflag [#allocation3], %s187
          %s189 = sand.u32 %s27, 1
          %s190 = smul.addr %s189, 128
          %s191 = scalar_lea.vmem [#allocation2], %s190
          %s192 = smul.u32 16, %s17
          %s194 = ssub.s32 2048, 2048
          %195 = vsyncadd %s188, %s194
          %s196 = smul.addr %s192, 128
          %s197 = scalar_lea.hbm %s0, %s196
          %s198 = sshll.u32 %s191, 4
          %s199 = int_to_ptr.vmem [resolvable:$true] %s198
          %204 = dma.hbm_to_vmem [thread:$0]  %s197, 2048, %s199, %s188, 128, 128, 8
        $region36: #{tpu_custom_call.1} parent=31 // pred_fallthru
          _
      $region32: #{tpu_custom_call.1} parent=5 // pred_fallthru
        _
      %p205 = scmp.le.s32.totalorder 1, %s17
      %p206 = scmp.lt.s32.totalorder %s17, 3
      %p207 = pnand %p205, %p206
      %p208 = pneg %p207
      // Predicated region
      $region37: #{tpu_custom_call.1} parent=5 // pred_check
        _
      $region38: #{tpu_custom_call.1} parent=5 // pred_check_branch
        %210 = sbr.rel (%p207) target = $region40
      $region39: #{tpu_custom_call.1} parent=5 // pred_region
        %s211 = ssub.s32 %s17, 1
        %s212 = sand.u32 %s30, 1
        %s213 = scalar_lea.sflag [#allocation3], %s212
        %s214 = sand.u32 %s30, 1
        %s215 = smul.addr %s214, 128
        %s216 = scalar_lea.vmem [#allocation2], %s215
        // Predicated region
        $region41: #{tpu_custom_call.1} parent=39 // pred_check
          %p217 = pneg %p43
        $region42: #{tpu_custom_call.1} parent=39 // pred_check_branch
          %219 = sbr.rel (%p217) target = $region44
        $region43: #{tpu_custom_call.1} parent=39 // pred_region
          %220 = dma.done %s213, 2048
        $region44: #{tpu_custom_call.1} parent=39 // pred_fallthru
          _
        %s221 = sand.u32 %s30, 1
        %s222 = scalar_lea.sflag [#allocation3], %s221
        %s223 = sand.u32 %s30, 1
        %s224 = smul.addr %s223, 128
        %s225 = scalar_lea.vmem [#allocation2], %s224
        %p226 = pneg %p43
        %p227 = pneg %p40
        %p228 = pneg %p64
        %p229 = pneg %p61
        %p230 = pneg %p85
        %p231 = pneg %p82
        %p232 = pneg %p106
        %p233 = pneg %p103
        %p234 = pneg %p127
        %p235 = pneg %p124
        %p236 = pneg %p153
        %p237 = pneg %p150
        %s238 = sand.u32 %s140, 1
        %s239 = scalar_lea.sflag [#allocation4], %s238
        %s240 = sand.u32 %s140, 1
        %s241 = smul.addr %s240, 128
        %s242 = scalar_lea.vmem [#allocation5], %s241
        %s243 = smul.u32 16, %s22
        %s244 = smul.u32 16, %s22
        %v245 = vld [vmem:[%s216] sm:$0xff]
        %v246 = vld [vmem:[%s216 + $0x8] sm:$0xff]
        %v247 = vld [vmem:[%s216 + $0x10] sm:$0xff]
        %v248 = vld [vmem:[%s216 + $0x18] sm:$0xff]
        %v249 = vld [vmem:[%s216 + $0x20] sm:$0xff]
        %v250 = vld [vmem:[%s216 + $0x28] sm:$0xff]
        %v251 = vld [vmem:[%s216 + $0x30] sm:$0xff]
        %v252 = vld [vmem:[%s216 + $0x38] sm:$0xff]
        %v253 = vld [vmem:[%s216 + $0x40] sm:$0xff]
        %v254 = vld [vmem:[%s216 + $0x48] sm:$0xff]
        %v255 = vld [vmem:[%s216 + $0x50] sm:$0xff]
        %v256 = vld [vmem:[%s216 + $0x58] sm:$0xff]
        %v257 = vld [vmem:[%s216 + $0x60] sm:$0xff]
        %v258 = vld [vmem:[%s216 + $0x68] sm:$0xff]
        %v259 = vld [vmem:[%s216 + $0x70] sm:$0xff]
        %v260 = vld [vmem:[%s216 + $0x78] sm:$0xff]
        %v261 = vld [vmem:[%s1] sm:$0xff]
        %v262 = vld [vmem:[%s1 + $0x8] sm:$0xff]
        %v263 = vld [vmem:[%s1 + $0x10] sm:$0xff]
        %v264 = vld [vmem:[%s1 + $0x18] sm:$0xff]
        %v265 = vld [vmem:[%s1 + $0x20] sm:$0xff]
        %v266 = vld [vmem:[%s1 + $0x28] sm:$0xff]
        %v267 = vld [vmem:[%s1 + $0x30] sm:$0xff]
        %v268 = vld [vmem:[%s1 + $0x38] sm:$0xff]
        %v269 = vld [vmem:[%s1 + $0x40] sm:$0xff]
        %v270 = vld [vmem:[%s1 + $0x48] sm:$0xff]
        %v271 = vld [vmem:[%s1 + $0x50] sm:$0xff]
        %v272 = vld [vmem:[%s1 + $0x58] sm:$0xff]
        %v273 = vld [vmem:[%s1 + $0x60] sm:$0xff]
        %v274 = vld [vmem:[%s1 + $0x68] sm:$0xff]
        %v275 = vld [vmem:[%s1 + $0x70] sm:$0xff]
        %v276 = vld [vmem:[%s1 + $0x78] sm:$0xff]
        %v277 = vld [vmem:[%s2] sm:$0x1]
        %v279 = vlaneseq
        %v280 = vshrl.u32 %v279, 7
        %v281 = vsub.s32 0, %v280
        %v282 = vrot.slane %v277, %v281
        %284 = vmatprep.subr.mxu0 0.0
        %285 = vmatpush1.msra.mxu0 %v276
        %286 = vmatprep.subr.mxu0 0.0
        %287 = vmatpush1.msra.mxu0 %v275
        %288 = vmatprep.subr.mxu0 0.0
        %289 = vmatpush1.msra.mxu0 %v274
        %290 = vmatprep.subr.mxu0 0.0
        %291 = vmatpush1.msra.mxu0 %v273
        %292 = vmatprep.subr.mxu0 0.0
        %293 = vmatpush1.msra.mxu0 %v272
        %294 = vmatprep.subr.mxu0 0.0
        %295 = vmatpush1.msra.mxu0 %v271
        %296 = vmatprep.subr.mxu0 0.0
        %297 = vmatpush1.msra.mxu0 %v270
        %298 = vmatprep.subr.mxu0 0.0
        %299 = vmatpush1.msra.mxu0 %v269
        %300 = vmatprep.subr.mxu0 0.0
        %301 = vmatpush1.msra.mxu0 %v268
        %302 = vmatprep.subr.mxu0 0.0
        %303 = vmatpush1.msra.mxu0 %v267
        %304 = vmatprep.subr.mxu0 0.0
        %305 = vmatpush1.msra.mxu0 %v266
        %306 = vmatprep.subr.mxu0 0.0
        %307 = vmatpush1.msra.mxu0 %v265
        %308 = vmatprep.subr.mxu0 0.0
        %309 = vmatpush1.msra.mxu0 %v264
        %310 = vmatprep.subr.mxu0 0.0
        %311 = vmatpush1.msra.mxu0 %v263
        %312 = vmatprep.subr.mxu0 0.0
        %313 = vmatpush1.msra.mxu0 %v262
        %314 = vmatprep.subr.mxu0 0.0
        %315 = vmatpush1.msra.mxu0 %v261
        %316 = vmatprep.subr.mxu0 0.0
        %317 = vmatpush2.msra.mxu0 0.0
        %318 = vmatprep.subr.mxu0 0.0
        %319 = vmatpush2.msra.mxu0 0.0
        %320 = vmatprep.subr.mxu0 0.0
        %321 = vmatpush2.msra.mxu0 0.0
        %322 = vmatprep.subr.mxu0 0.0
        %323 = vmatpush2.msra.mxu0 0.0
        %324 = vmatprep.subr.mxu0 0.0
        %325 = vmatpush2.msra.mxu0 0.0
        %326 = vmatprep.subr.mxu0 0.0
        %327 = vmatpush2.msra.mxu0 0.0
        %328 = vmatprep.subr.mxu0 0.0
        %329 = vmatpush2.msra.mxu0 0.0
        %330 = vmatprep.subr.mxu0 0.0
        %331 = vmatpush2.msra.mxu0 0.0
        %332 = vmatprep.subr.mxu0 0.0
        %333 = vmatpush2.msra.mxu0 0.0
        %334 = vmatprep.subr.mxu0 0.0
        %335 = vmatpush2.msra.mxu0 0.0
        %336 = vmatprep.subr.mxu0 0.0
        %337 = vmatpush2.msra.mxu0 0.0
        %338 = vmatprep.subr.mxu0 0.0
        %339 = vmatpush2.msra.mxu0 0.0
        %340 = vmatprep.subr.mxu0 0.0
        %341 = vmatpush2.msra.mxu0 0.0
        %342 = vmatprep.subr.mxu0 0.0
        %343 = vmatpush2.msra.mxu0 0.0
        %344 = vmatprep.subr.mxu0 0.0
        %345 = vmatpush2.msra.mxu0 0.0
        %346 = vmatprep.subr.mxu0 0.0
        %347 = vmatpush2.msra.mxu0 0.0
        %348 = vmatprep.mubr.f32.mxu0 0.0
        %349 = vmatmul.mubr.f32.gmra.mxu0 %v245
        %v350 = vpop.f32.mrf.mxu0
        %v351 = vadd.f32 %v282, %v350
        %v352 = vpop.f32.mrf.mxu0
        %353 = vmatprep.mubr.f32.mxu0 0.0
        %354 = vmatmul.mubr.f32.gmra.mxu0 %v246
        %v355 = vpop.f32.mrf.mxu0
        %v356 = vadd.f32 %v282, %v355
        %v357 = vpop.f32.mrf.mxu0
        %358 = vmatprep.mubr.f32.mxu0 0.0
        %359 = vmatmul.mubr.f32.gmra.mxu0 %v247
        %v360 = vpop.f32.mrf.mxu0
        %v361 = vadd.f32 %v282, %v360
        %v362 = vpop.f32.mrf.mxu0
        %363 = vmatprep.mubr.f32.mxu0 0.0
        %364 = vmatmul.mubr.f32.gmra.mxu0 %v248
        %v365 = vpop.f32.mrf.mxu0
        %v366 = vadd.f32 %v282, %v365
        %v367 = vpop.f32.mrf.mxu0
        %368 = vmatprep.mubr.f32.mxu0 0.0
        %369 = vmatmul.mubr.f32.gmra.mxu0 %v249
        %v370 = vpop.f32.mrf.mxu0
        %v371 = vadd.f32 %v282, %v370
        %v372 = vpop.f32.mrf.mxu0
        %373 = vmatprep.mubr.f32.mxu0 0.0
        %374 = vmatmul.mubr.f32.gmra.mxu0 %v250
        %v375 = vpop.f32.mrf.mxu0
        %v376 = vadd.f32 %v282, %v375
        %v377 = vpop.f32.mrf.mxu0
        %378 = vmatprep.mubr.f32.mxu0 0.0
        %379 = vmatmul.mubr.f32.gmra.mxu0 %v251
        %v380 = vpop.f32.mrf.mxu0
        %v381 = vadd.f32 %v282, %v380
        %v382 = vpop.f32.mrf.mxu0
        %383 = vmatprep.mubr.f32.mxu0 0.0
        %384 = vmatmul.mubr.f32.gmra.mxu0 %v252
        %v385 = vpop.f32.mrf.mxu0
        %v386 = vadd.f32 %v282, %v385
        %v387 = vpop.f32.mrf.mxu0
        %388 = vmatprep.mubr.f32.mxu0 0.0
        %389 = vmatmul.mubr.f32.gmra.mxu0 %v253
        %v390 = vpop.f32.mrf.mxu0
        %v391 = vadd.f32 %v282, %v390
        %v392 = vpop.f32.mrf.mxu0
        %393 = vmatprep.mubr.f32.mxu0 0.0
        %394 = vmatmul.mubr.f32.gmra.mxu0 %v254
        %v395 = vpop.f32.mrf.mxu0
        %v396 = vadd.f32 %v282, %v395
        %v397 = vpop.f32.mrf.mxu0
        %398 = vmatprep.mubr.f32.mxu0 0.0
        %399 = vmatmul.mubr.f32.gmra.mxu0 %v255
        %v400 = vpop.f32.mrf.mxu0
        %v401 = vadd.f32 %v282, %v400
        %v402 = vpop.f32.mrf.mxu0
        %403 = vmatprep.mubr.f32.mxu0 0.0
        %404 = vmatmul.mubr.f32.gmra.mxu0 %v256
        %v405 = vpop.f32.mrf.mxu0
        %v406 = vadd.f32 %v282, %v405
        %v407 = vpop.f32.mrf.mxu0
        %408 = vmatprep.mubr.f32.mxu0 0.0
        %409 = vmatmul.mubr.f32.gmra.mxu0 %v257
        %v410 = vpop.f32.mrf.mxu0
        %v411 = vadd.f32 %v282, %v410
        %v412 = vpop.f32.mrf.mxu0
        %413 = vmatprep.mubr.f32.mxu0 0.0
        %414 = vmatmul.mubr.f32.gmra.mxu0 %v258
        %v415 = vpop.f32.mrf.mxu0
        %v416 = vadd.f32 %v282, %v415
        %v417 = vpop.f32.mrf.mxu0
        %418 = vmatprep.mubr.f32.mxu0 0.0
        %419 = vmatmul.mubr.f32.gmra.mxu0 %v259
        %v420 = vpop.f32.mrf.mxu0
        %v421 = vadd.f32 %v282, %v420
        %v422 = vpop.f32.mrf.mxu0
        %423 = vmatprep.mubr.f32.mxu0 0.0
        %424 = vmatmul.mubr.f32.gmra.mxu0 %v260
        %v425 = vpop.f32.mrf.mxu0
        %v426 = vadd.f32 %v282, %v425
        %v427 = vpop.f32.mrf.mxu0
        %428 = vdwg.mxu0
        %v429 = vmax.f32 %v351, 0.0
        %v430 = vmax.f32 %v356, 0.0
        %v431 = vmax.f32 %v361, 0.0
        %v432 = vmax.f32 %v366, 0.0
        %v433 = vmax.f32 %v371, 0.0
        %v434 = vmax.f32 %v376, 0.0
        %v435 = vmax.f32 %v381, 0.0
        %v436 = vmax.f32 %v386, 0.0
        %v437 = vmax.f32 %v391, 0.0
        %v438 = vmax.f32 %v396, 0.0
        %v439 = vmax.f32 %v401, 0.0
        %v440 = vmax.f32 %v406, 0.0
        %v441 = vmax.f32 %v411, 0.0
        %v442 = vmax.f32 %v416, 0.0
        %v443 = vmax.f32 %v421, 0.0
        %v444 = vmax.f32 %v426, 0.0
        %v445 = vld [vmem:[%s3] sm:$0xff]
        %v446 = vld [vmem:[%s3 + $0x8] sm:$0xff]
        %v447 = vld [vmem:[%s3 + $0x10] sm:$0xff]
        %v448 = vld [vmem:[%s3 + $0x18] sm:$0xff]
        %v449 = vld [vmem:[%s3 + $0x20] sm:$0xff]
        %v450 = vld [vmem:[%s3 + $0x28] sm:$0xff]
        %v451 = vld [vmem:[%s3 + $0x30] sm:$0xff]
        %v452 = vld [vmem:[%s3 + $0x38] sm:$0xff]
        %v453 = vld [vmem:[%s3 + $0x40] sm:$0xff]
        %v454 = vld [vmem:[%s3 + $0x48] sm:$0xff]
        %v455 = vld [vmem:[%s3 + $0x50] sm:$0xff]
        %v456 = vld [vmem:[%s3 + $0x58] sm:$0xff]
        %v457 = vld [vmem:[%s3 + $0x60] sm:$0xff]
        %v458 = vld [vmem:[%s3 + $0x68] sm:$0xff]
        %v459 = vld [vmem:[%s3 + $0x70] sm:$0xff]
        %v460 = vld [vmem:[%s3 + $0x78] sm:$0xff]
        %v461 = vld [vmem:[%s4] sm:$0x1]
        %v463 = vlaneseq
        %v464 = vshrl.u32 %v463, 7
        %v465 = vsub.s32 0, %v464
        %v466 = vrot.slane %v461, %v465
        %468 = vmatprep.subr.mxu0 0.0
        %469 = vmatpush1.msra.mxu0 %v460
        %470 = vmatprep.subr.mxu0 0.0
        %471 = vmatpush1.msra.mxu0 %v459
        %472 = vmatprep.subr.mxu0 0.0
        %473 = vmatpush1.msra.mxu0 %v458
        %474 = vmatprep.subr.mxu0 0.0
        %475 = vmatpush1.msra.mxu0 %v457
        %476 = vmatprep.subr.mxu0 0.0
        %477 = vmatpush1.msra.mxu0 %v456
        %478 = vmatprep.subr.mxu0 0.0
        %479 = vmatpush1.msra.mxu0 %v455
        %480 = vmatprep.subr.mxu0 0.0
        %481 = vmatpush1.msra.mxu0 %v454
        %482 = vmatprep.subr.mxu0 0.0
        %483 = vmatpush1.msra.mxu0 %v453
        %484 = vmatprep.subr.mxu0 0.0
        %485 = vmatpush1.msra.mxu0 %v452
        %486 = vmatprep.subr.mxu0 0.0
        %487 = vmatpush1.msra.mxu0 %v451
        %488 = vmatprep.subr.mxu0 0.0
        %489 = vmatpush1.msra.mxu0 %v450
        %490 = vmatprep.subr.mxu0 0.0
        %491 = vmatpush1.msra.mxu0 %v449
        %492 = vmatprep.subr.mxu0 0.0
        %493 = vmatpush1.msra.mxu0 %v448
        %494 = vmatprep.subr.mxu0 0.0
        %495 = vmatpush1.msra.mxu0 %v447
        %496 = vmatprep.subr.mxu0 0.0
        %497 = vmatpush1.msra.mxu0 %v446
        %498 = vmatprep.subr.mxu0 0.0
        %499 = vmatpush1.msra.mxu0 %v445
        %500 = vmatprep.subr.mxu0 0.0
        %501 = vmatpush2.msra.mxu0 0.0
        %502 = vmatprep.subr.mxu0 0.0
        %503 = vmatpush2.msra.mxu0 0.0
        %504 = vmatprep.subr.mxu0 0.0
        %505 = vmatpush2.msra.mxu0 0.0
        %506 = vmatprep.subr.mxu0 0.0
        %507 = vmatpush2.msra.mxu0 0.0
        %508 = vmatprep.subr.mxu0 0.0
        %509 = vmatpush2.msra.mxu0 0.0
        %510 = vmatprep.subr.mxu0 0.0
        %511 = vmatpush2.msra.mxu0 0.0
        %512 = vmatprep.subr.mxu0 0.0
        %513 = vmatpush2.msra.mxu0 0.0
        %514 = vmatprep.subr.mxu0 0.0
        %515 = vmatpush2.msra.mxu0 0.0
        %516 = vmatprep.subr.mxu0 0.0
        %517 = vmatpush2.msra.mxu0 0.0
        %518 = vmatprep.subr.mxu0 0.0
        %519 = vmatpush2.msra.mxu0 0.0
        %520 = vmatprep.subr.mxu0 0.0
        %521 = vmatpush2.msra.mxu0 0.0
        %522 = vmatprep.subr.mxu0 0.0
        %523 = vmatpush2.msra.mxu0 0.0
        %524 = vmatprep.subr.mxu0 0.0
        %525 = vmatpush2.msra.mxu0 0.0
        %526 = vmatprep.subr.mxu0 0.0
        %527 = vmatpush2.msra.mxu0 0.0
        %528 = vmatprep.subr.mxu0 0.0
        %529 = vmatpush2.msra.mxu0 0.0
        %530 = vmatprep.subr.mxu0 0.0
        %531 = vmatpush2.msra.mxu0 0.0
        %532 = vmatprep.mubr.f32.mxu0 0.0
        %533 = vmatmul.mubr.f32.gmra.mxu0 %v429
        %v534 = vpop.f32.mrf.mxu0
        %v535 = vadd.f32 %v466, %v534
        %v536 = vpop.f32.mrf.mxu0
        %537 = vmatprep.mubr.f32.mxu0 0.0
        %538 = vmatmul.mubr.f32.gmra.mxu0 %v430
        %v539 = vpop.f32.mrf.mxu0
        %v540 = vadd.f32 %v466, %v539
        %v541 = vpop.f32.mrf.mxu0
        %542 = vmatprep.mubr.f32.mxu0 0.0
        %543 = vmatmul.mubr.f32.gmra.mxu0 %v431
        %v544 = vpop.f32.mrf.mxu0
        %v545 = vadd.f32 %v466, %v544
        %v546 = vpop.f32.mrf.mxu0
        %547 = vmatprep.mubr.f32.mxu0 0.0
        %548 = vmatmul.mubr.f32.gmra.mxu0 %v432
        %v549 = vpop.f32.mrf.mxu0
        %v550 = vadd.f32 %v466, %v549
        %v551 = vpop.f32.mrf.mxu0
        %552 = vmatprep.mubr.f32.mxu0 0.0
        %553 = vmatmul.mubr.f32.gmra.mxu0 %v433
        %v554 = vpop.f32.mrf.mxu0
        %v555 = vadd.f32 %v466, %v554
        %v556 = vpop.f32.mrf.mxu0
        %557 = vmatprep.mubr.f32.mxu0 0.0
        %558 = vmatmul.mubr.f32.gmra.mxu0 %v434
        %v559 = vpop.f32.mrf.mxu0
        %v560 = vadd.f32 %v466, %v559
        %v561 = vpop.f32.mrf.mxu0
        %562 = vmatprep.mubr.f32.mxu0 0.0
        %563 = vmatmul.mubr.f32.gmra.mxu0 %v435
        %v564 = vpop.f32.mrf.mxu0
        %v565 = vadd.f32 %v466, %v564
        %v566 = vpop.f32.mrf.mxu0
        %567 = vmatprep.mubr.f32.mxu0 0.0
        %568 = vmatmul.mubr.f32.gmra.mxu0 %v436
        %v569 = vpop.f32.mrf.mxu0
        %v570 = vadd.f32 %v466, %v569
        %v571 = vpop.f32.mrf.mxu0
        %572 = vmatprep.mubr.f32.mxu0 0.0
        %573 = vmatmul.mubr.f32.gmra.mxu0 %v437
        %v574 = vpop.f32.mrf.mxu0
        %v575 = vadd.f32 %v466, %v574
        %v576 = vpop.f32.mrf.mxu0
        %577 = vmatprep.mubr.f32.mxu0 0.0
        %578 = vmatmul.mubr.f32.gmra.mxu0 %v438
        %v579 = vpop.f32.mrf.mxu0
        %v580 = vadd.f32 %v466, %v579
        %v581 = vpop.f32.mrf.mxu0
        %582 = vmatprep.mubr.f32.mxu0 0.0
        %583 = vmatmul.mubr.f32.gmra.mxu0 %v439
        %v584 = vpop.f32.mrf.mxu0
        %v585 = vadd.f32 %v466, %v584
        %v586 = vpop.f32.mrf.mxu0
        %587 = vmatprep.mubr.f32.mxu0 0.0
        %588 = vmatmul.mubr.f32.gmra.mxu0 %v440
        %v589 = vpop.f32.mrf.mxu0
        %v590 = vadd.f32 %v466, %v589
        %v591 = vpop.f32.mrf.mxu0
        %592 = vmatprep.mubr.f32.mxu0 0.0
        %593 = vmatmul.mubr.f32.gmra.mxu0 %v441
        %v594 = vpop.f32.mrf.mxu0
        %v595 = vadd.f32 %v466, %v594
        %v596 = vpop.f32.mrf.mxu0
        %597 = vmatprep.mubr.f32.mxu0 0.0
        %598 = vmatmul.mubr.f32.gmra.mxu0 %v442
        %v599 = vpop.f32.mrf.mxu0
        %v600 = vadd.f32 %v466, %v599
        %v601 = vpop.f32.mrf.mxu0
        %602 = vmatprep.mubr.f32.mxu0 0.0
        %603 = vmatmul.mubr.f32.gmra.mxu0 %v443
        %v604 = vpop.f32.mrf.mxu0
        %v605 = vadd.f32 %v466, %v604
        %v606 = vpop.f32.mrf.mxu0
        %607 = vmatprep.mubr.f32.mxu0 0.0
        %608 = vmatmul.mubr.f32.gmra.mxu0 %v444
        %v609 = vpop.f32.mrf.mxu0
        %v610 = vadd.f32 %v466, %v609
        %v611 = vpop.f32.mrf.mxu0
        %612 = vdwg.mxu0
        %vm613 = vcmask 23552
        %v614 = vsel %vm613, %v535, -inf
        %615 = vmax.xlane.f32.xlu0 %v614
        %v616 = vpop.xlane.xlu0 %615
        %v617 = vsel %vm613, %v540, -inf
        %618 = vmax.xlane.f32.xlu0 %v617
        %v619 = vpop.xlane.xlu0 %618
        %v620 = vsel %vm613, %v545, -inf
        %621 = vmax.xlane.f32.xlu0 %v620
        %v622 = vpop.xlane.xlu0 %621
        %v623 = vsel %vm613, %v550, -inf
        %624 = vmax.xlane.f32.xlu0 %v623
        %v625 = vpop.xlane.xlu0 %624
        %v626 = vsel %vm613, %v555, -inf
        %627 = vmax.xlane.f32.xlu0 %v626
        %v628 = vpop.xlane.xlu0 %627
        %v629 = vsel %vm613, %v560, -inf
        %630 = vmax.xlane.f32.xlu0 %v629
        %v631 = vpop.xlane.xlu0 %630
        %v632 = vsel %vm613, %v565, -inf
        %633 = vmax.xlane.f32.xlu0 %v632
        %v634 = vpop.xlane.xlu0 %633
        %v635 = vsel %vm613, %v570, -inf
        %636 = vmax.xlane.f32.xlu0 %v635
        %v637 = vpop.xlane.xlu0 %636
        %v638 = vsel %vm613, %v575, -inf
        %639 = vmax.xlane.f32.xlu0 %v638
        %v640 = vpop.xlane.xlu0 %639
        %v641 = vsel %vm613, %v580, -inf
        %642 = vmax.xlane.f32.xlu0 %v641
        %v643 = vpop.xlane.xlu0 %642
        %v644 = vsel %vm613, %v585, -inf
        %645 = vmax.xlane.f32.xlu0 %v644
        %v646 = vpop.xlane.xlu0 %645
        %v647 = vsel %vm613, %v590, -inf
        %648 = vmax.xlane.f32.xlu0 %v647
        %v649 = vpop.xlane.xlu0 %648
        %v650 = vsel %vm613, %v595, -inf
        %651 = vmax.xlane.f32.xlu0 %v650
        %v652 = vpop.xlane.xlu0 %651
        %v653 = vsel %vm613, %v600, -inf
        %654 = vmax.xlane.f32.xlu0 %v653
        %v655 = vpop.xlane.xlu0 %654
        %v656 = vsel %vm613, %v605, -inf
        %657 = vmax.xlane.f32.xlu0 %v656
        %v658 = vpop.xlane.xlu0 %657
        %v659 = vsel %vm613, %v610, -inf
        %660 = vmax.xlane.f32.xlu0 %v659
        %v661 = vpop.xlane.xlu0 %660
        %v662 = vsub.f32 %v535, %v616
        %v663 = vsub.f32 %v540, %v619
        %v664 = vsub.f32 %v545, %v622
        %v665 = vsub.f32 %v550, %v625
        %v666 = vsub.f32 %v555, %v628
        %v667 = vsub.f32 %v560, %v631
        %v668 = vsub.f32 %v565, %v634
        %v669 = vsub.f32 %v570, %v637
        %v670 = vsub.f32 %v575, %v640
        %v671 = vsub.f32 %v580, %v643
        %v672 = vsub.f32 %v585, %v646
        %v673 = vsub.f32 %v590, %v649
        %v674 = vsub.f32 %v595, %v652
        %v675 = vsub.f32 %v600, %v655
        %v676 = vsub.f32 %v605, %v658
        %v677 = vsub.f32 %v610, %v661
        %v678 = vmul.f32 %v662, 1.442695
        %v679 = vpow.pop %v678
        %v680 = vmul.f32 %v663, 1.442695
        %v681 = vpow.pop %v680
        %v682 = vmul.f32 %v664, 1.442695
        %v683 = vpow.pop %v682
        %v684 = vmul.f32 %v665, 1.442695
        %v685 = vpow.pop %v684
        %v686 = vmul.f32 %v666, 1.442695
        %v687 = vpow.pop %v686
        %v688 = vmul.f32 %v667, 1.442695
        %v689 = vpow.pop %v688
        %v690 = vmul.f32 %v668, 1.442695
        %v691 = vpow.pop %v690
        %v692 = vmul.f32 %v669, 1.442695
        %v693 = vpow.pop %v692
        %v694 = vmul.f32 %v670, 1.442695
        %v695 = vpow.pop %v694
        %v696 = vmul.f32 %v671, 1.442695
        %v697 = vpow.pop %v696
        %v698 = vmul.f32 %v672, 1.442695
        %v699 = vpow.pop %v698
        %v700 = vmul.f32 %v673, 1.442695
        %v701 = vpow.pop %v700
        %v702 = vmul.f32 %v674, 1.442695
        %v703 = vpow.pop %v702
        %v704 = vmul.f32 %v675, 1.442695
        %v705 = vpow.pop %v704
        %v706 = vmul.f32 %v676, 1.442695
        %v707 = vpow.pop %v706
        %v708 = vmul.f32 %v677, 1.442695
        %v709 = vpow.pop %v708
        %v710 = vsel %vm613, %v679, 0.0
        %711 = vadd.xlane.f32.xlu0 %v710
        %v712 = vpop.xlane.xlu0 %711
        %v713 = vsel %vm613, %v681, 0.0
        %714 = vadd.xlane.f32.xlu0 %v713
        %v715 = vpop.xlane.xlu0 %714
        %v716 = vsel %vm613, %v683, 0.0
        %717 = vadd.xlane.f32.xlu0 %v716
        %v718 = vpop.xlane.xlu0 %717
        %v719 = vsel %vm613, %v685, 0.0
        %720 = vadd.xlane.f32.xlu0 %v719
        %v721 = vpop.xlane.xlu0 %720
        %v722 = vsel %vm613, %v687, 0.0
        %723 = vadd.xlane.f32.xlu0 %v722
        %v724 = vpop.xlane.xlu0 %723
        %v725 = vsel %vm613, %v689, 0.0
        %726 = vadd.xlane.f32.xlu0 %v725
        %v727 = vpop.xlane.xlu0 %726
        %v728 = vsel %vm613, %v691, 0.0
        %729 = vadd.xlane.f32.xlu0 %v728
        %v730 = vpop.xlane.xlu0 %729
        %v731 = vsel %vm613, %v693, 0.0
        %732 = vadd.xlane.f32.xlu0 %v731
        %v733 = vpop.xlane.xlu0 %732
        %v734 = vsel %vm613, %v695, 0.0
        %735 = vadd.xlane.f32.xlu0 %v734
        %v736 = vpop.xlane.xlu0 %735
        %v737 = vsel %vm613, %v697, 0.0
        %738 = vadd.xlane.f32.xlu0 %v737
        %v739 = vpop.xlane.xlu0 %738
        %v740 = vsel %vm613, %v699, 0.0
        %741 = vadd.xlane.f32.xlu0 %v740
        %v742 = vpop.xlane.xlu0 %741
        %v743 = vsel %vm613, %v701, 0.0
        %744 = vadd.xlane.f32.xlu0 %v743
        %v745 = vpop.xlane.xlu0 %744
        %v746 = vsel %vm613, %v703, 0.0
        %747 = vadd.xlane.f32.xlu0 %v746
        %v748 = vpop.xlane.xlu0 %747
        %v749 = vsel %vm613, %v705, 0.0
        %750 = vadd.xlane.f32.xlu0 %v749
        %v751 = vpop.xlane.xlu0 %750
        %v752 = vsel %vm613, %v707, 0.0
        %753 = vadd.xlane.f32.xlu0 %v752
        %v754 = vpop.xlane.xlu0 %753
        %v755 = vsel %vm613, %v709, 0.0
        %756 = vadd.xlane.f32.xlu0 %v755
        %v757 = vpop.xlane.xlu0 %756
        %v758 = vrcp.pop %v712
        %v759 = vmul.f32 %v679, %v758
        %v760 = vrcp.pop %v715
        %v761 = vmul.f32 %v681, %v760
        %v762 = vrcp.pop %v718
        %v763 = vmul.f32 %v683, %v762
        %v764 = vrcp.pop %v721
        %v765 = vmul.f32 %v685, %v764
        %v766 = vrcp.pop %v724
        %v767 = vmul.f32 %v687, %v766
        %v768 = vrcp.pop %v727
        %v769 = vmul.f32 %v689, %v768
        %v770 = vrcp.pop %v730
        %v771 = vmul.f32 %v691, %v770
        %v772 = vrcp.pop %v733
        %v773 = vmul.f32 %v693, %v772
        %v774 = vrcp.pop %v736
        %v775 = vmul.f32 %v695, %v774
        %v776 = vrcp.pop %v739
        %v777 = vmul.f32 %v697, %v776
        %v778 = vrcp.pop %v742
        %v779 = vmul.f32 %v699, %v778
        %v780 = vrcp.pop %v745
        %v781 = vmul.f32 %v701, %v780
        %v782 = vrcp.pop %v748
        %v783 = vmul.f32 %v703, %v782
        %v784 = vrcp.pop %v751
        %v785 = vmul.f32 %v705, %v784
        %v786 = vrcp.pop %v754
        %v787 = vmul.f32 %v707, %v786
        %v788 = vrcp.pop %v757
        %v789 = vmul.f32 %v709, %v788
        %v790 = vlog2.pop %v712
        %v791 = vmul.f32 %v790, 0.6931472
        %v792 = vlog2.pop %v715
        %v793 = vmul.f32 %v792, 0.6931472
        %v794 = vlog2.pop %v718
        %v795 = vmul.f32 %v794, 0.6931472
        %v796 = vlog2.pop %v721
        %v797 = vmul.f32 %v796, 0.6931472
        %v798 = vlog2.pop %v724
        %v799 = vmul.f32 %v798, 0.6931472
        %v800 = vlog2.pop %v727
        %v801 = vmul.f32 %v800, 0.6931472
        %v802 = vlog2.pop %v730
        %v803 = vmul.f32 %v802, 0.6931472
        %v804 = vlog2.pop %v733
        %v805 = vmul.f32 %v804, 0.6931472
        %v806 = vlog2.pop %v736
        %v807 = vmul.f32 %v806, 0.6931472
        %v808 = vlog2.pop %v739
        %v809 = vmul.f32 %v808, 0.6931472
        %v810 = vlog2.pop %v742
        %v811 = vmul.f32 %v810, 0.6931472
        %v812 = vlog2.pop %v745
        %v813 = vmul.f32 %v812, 0.6931472
        %v814 = vlog2.pop %v748
        %v815 = vmul.f32 %v814, 0.6931472
        %v816 = vlog2.pop %v751
        %v817 = vmul.f32 %v816, 0.6931472
        %v818 = vlog2.pop %v754
        %v819 = vmul.f32 %v818, 0.6931472
        %v820 = vlog2.pop %v757
        %v821 = vmul.f32 %v820, 0.6931472
        %v822 = vsub.f32 %v662, %v791
        %v823 = vsub.f32 %v663, %v793
        %v824 = vsub.f32 %v664, %v795
        %v825 = vsub.f32 %v665, %v797
        %v826 = vsub.f32 %v666, %v799
        %v827 = vsub.f32 %v667, %v801
        %v828 = vsub.f32 %v668, %v803
        %v829 = vsub.f32 %v669, %v805
        %v830 = vsub.f32 %v670, %v807
        %v831 = vsub.f32 %v671, %v809
        %v832 = vsub.f32 %v672, %v811
        %v833 = vsub.f32 %v673, %v813
        %v834 = vsub.f32 %v674, %v815
        %v835 = vsub.f32 %v675, %v817
        %v836 = vsub.f32 %v676, %v819
        %v837 = vsub.f32 %v677, %v821
        %v838 = vmul.f32 %v759, %v822
        %v839 = vmul.f32 %v761, %v823
        %v840 = vmul.f32 %v763, %v824
        %v841 = vmul.f32 %v765, %v825
        %v842 = vmul.f32 %v767, %v826
        %v843 = vmul.f32 %v769, %v827
        %v844 = vmul.f32 %v771, %v828
        %v845 = vmul.f32 %v773, %v829
        %v846 = vmul.f32 %v775, %v830
        %v847 = vmul.f32 %v777, %v831
        %v848 = vmul.f32 %v779, %v832
        %v849 = vmul.f32 %v781, %v833
        %v850 = vmul.f32 %v783, %v834
        %v851 = vmul.f32 %v785, %v835
        %v852 = vmul.f32 %v787, %v836
        %v853 = vmul.f32 %v789, %v837
        %v854 = vsel %vm613, %v838, 0.0
        %855 = vadd.xlane.f32.xlu0 %v854
        %v856 = vpop.xlane.xlu0 %855
        %v857 = vsel %vm613, %v839, 0.0
        %858 = vadd.xlane.f32.xlu0 %v857
        %v859 = vpop.xlane.xlu0 %858
        %v860 = vsel %vm613, %v840, 0.0
        %861 = vadd.xlane.f32.xlu0 %v860
        %v862 = vpop.xlane.xlu0 %861
        %v863 = vsel %vm613, %v841, 0.0
        %864 = vadd.xlane.f32.xlu0 %v863
        %v865 = vpop.xlane.xlu0 %864
        %v866 = vsel %vm613, %v842, 0.0
        %867 = vadd.xlane.f32.xlu0 %v866
        %v868 = vpop.xlane.xlu0 %867
        %v869 = vsel %vm613, %v843, 0.0
        %870 = vadd.xlane.f32.xlu0 %v869
        %v871 = vpop.xlane.xlu0 %870
        %v872 = vsel %vm613, %v844, 0.0
        %873 = vadd.xlane.f32.xlu0 %v872
        %v874 = vpop.xlane.xlu0 %873
        %v875 = vsel %vm613, %v845, 0.0
        %876 = vadd.xlane.f32.xlu0 %v875
        %v877 = vpop.xlane.xlu0 %876
        %v878 = vsel %vm613, %v846, 0.0
        %879 = vadd.xlane.f32.xlu0 %v878
        %v880 = vpop.xlane.xlu0 %879
        %v881 = vsel %vm613, %v847, 0.0
        %882 = vadd.xlane.f32.xlu0 %v881
        %v883 = vpop.xlane.xlu0 %882
        %v884 = vsel %vm613, %v848, 0.0
        %885 = vadd.xlane.f32.xlu0 %v884
        %v886 = vpop.xlane.xlu0 %885
        %v887 = vsel %vm613, %v849, 0.0
        %888 = vadd.xlane.f32.xlu0 %v887
        %v889 = vpop.xlane.xlu0 %888
        %v890 = vsel %vm613, %v850, 0.0
        %891 = vadd.xlane.f32.xlu0 %v890
        %v892 = vpop.xlane.xlu0 %891
        %v893 = vsel %vm613, %v851, 0.0
        %894 = vadd.xlane.f32.xlu0 %v893
        %v895 = vpop.xlane.xlu0 %894
        %v896 = vsel %vm613, %v852, 0.0
        %897 = vadd.xlane.f32.xlu0 %v896
        %v898 = vpop.xlane.xlu0 %897
        %v899 = vsel %vm613, %v853, 0.0
        %900 = vadd.xlane.f32.xlu0 %v899
        %v901 = vpop.xlane.xlu0 %900
        %v902 = vsub.f32 0.0, %v856
        %v903 = vsub.f32 0.0, %v859
        %v904 = vsub.f32 0.0, %v862
        %v905 = vsub.f32 0.0, %v865
        %v906 = vsub.f32 0.0, %v868
        %v907 = vsub.f32 0.0, %v871
        %v908 = vsub.f32 0.0, %v874
        %v909 = vsub.f32 0.0, %v877
        %v910 = vsub.f32 0.0, %v880
        %v911 = vsub.f32 0.0, %v883
        %v912 = vsub.f32 0.0, %v886
        %v913 = vsub.f32 0.0, %v889
        %v914 = vsub.f32 0.0, %v892
        %v915 = vsub.f32 0.0, %v895
        %v916 = vsub.f32 0.0, %v898
        %v917 = vsub.f32 0.0, %v901
        %v918 = vsel %vm613, %v759, %v535
        %v919 = vsel %vm613, %v761, %v540
        %v920 = vsel %vm613, %v763, %v545
        %v921 = vsel %vm613, %v765, %v550
        %v922 = vsel %vm613, %v767, %v555
        %v923 = vsel %vm613, %v769, %v560
        %v924 = vsel %vm613, %v771, %v565
        %v925 = vsel %vm613, %v773, %v570
        %v926 = vsel %vm613, %v775, %v575
        %v927 = vsel %vm613, %v777, %v580
        %v928 = vsel %vm613, %v779, %v585
        %v929 = vsel %vm613, %v781, %v590
        %v930 = vsel %vm613, %v783, %v595
        %v931 = vsel %vm613, %v785, %v600
        %v932 = vsel %vm613, %v787, %v605
        %v933 = vsel %vm613, %v789, %v610
        %vm934 = vcmask 31744
        %v935 = vsel %vm934, %v918, %v902
        %v936 = vsel %vm934, %v919, %v903
        %v937 = vsel %vm934, %v920, %v904
        %v938 = vsel %vm934, %v921, %v905
        %v939 = vsel %vm934, %v922, %v906
        %v940 = vsel %vm934, %v923, %v907
        %v941 = vsel %vm934, %v924, %v908
        %v942 = vsel %vm934, %v925, %v909
        %v943 = vsel %vm934, %v926, %v910
        %v944 = vsel %vm934, %v927, %v911
        %v945 = vsel %vm934, %v928, %v912
        %v946 = vsel %vm934, %v929, %v913
        %v947 = vsel %vm934, %v930, %v914
        %v948 = vsel %vm934, %v931, %v915
        %v949 = vsel %vm934, %v932, %v916
        %v950 = vsel %vm934, %v933, %v917
        %vm951 = vcmask 39936
        %v952 = vsel %vm951, %v935, 0.0
        %v953 = vsel %vm951, %v936, 0.0
        %v954 = vsel %vm951, %v937, 0.0
        %v955 = vsel %vm951, %v938, 0.0
        %v956 = vsel %vm951, %v939, 0.0
        %v957 = vsel %vm951, %v940, 0.0
        %v958 = vsel %vm951, %v941, 0.0
        %v959 = vsel %vm951, %v942, 0.0
        %v960 = vsel %vm951, %v943, 0.0
        %v961 = vsel %vm951, %v944, 0.0
        %v962 = vsel %vm951, %v945, 0.0
        %v963 = vsel %vm951, %v946, 0.0
        %v964 = vsel %vm951, %v947, 0.0
        %v965 = vsel %vm951, %v948, 0.0
        %v966 = vsel %vm951, %v949, 0.0
        %v967 = vsel %vm951, %v950, 0.0
        %968 = vst [vmem:[%s242] sm:$0xff] %v952
        %969 = vst [vmem:[%s242 + $0x8] sm:$0xff] %v953
        %970 = vst [vmem:[%s242 + $0x10] sm:$0xff] %v954
        %971 = vst [vmem:[%s242 + $0x18] sm:$0xff] %v955
        %972 = vst [vmem:[%s242 + $0x20] sm:$0xff] %v956
        %973 = vst [vmem:[%s242 + $0x28] sm:$0xff] %v957
        %974 = vst [vmem:[%s242 + $0x30] sm:$0xff] %v958
        %975 = vst [vmem:[%s242 + $0x38] sm:$0xff] %v959
        %976 = vst [vmem:[%s242 + $0x40] sm:$0xff] %v960
        %977 = vst [vmem:[%s242 + $0x48] sm:$0xff] %v961
        %978 = vst [vmem:[%s242 + $0x50] sm:$0xff] %v962
        %979 = vst [vmem:[%s242 + $0x58] sm:$0xff] %v963
        %980 = vst [vmem:[%s242 + $0x60] sm:$0xff] %v964
        %981 = vst [vmem:[%s242 + $0x68] sm:$0xff] %v965
        %982 = vst [vmem:[%s242 + $0x70] sm:$0xff] %v966
        %983 = vst [vmem:[%s242 + $0x78] sm:$0xff] %v967
        %s984 = sand.u32 %s140, 1
        %s985 = scalar_lea.sflag [#allocation4], %s984
        %s986 = sand.u32 %s140, 1
        %s987 = smul.addr %s986, 128
        %s988 = scalar_lea.vmem [#allocation5], %s987
        // Predicated region
        $region45: #{tpu_custom_call.1} parent=39 // pred_check
          %p989 = pneg %p150
        $region46: #{tpu_custom_call.1} parent=39 // pred_check_branch
          %991 = sbr.rel (%p989) target = $region48
        $region47: #{tpu_custom_call.1} parent=39 // pred_region
          %s992 = smul.u32 16, %s22
          %s994 = ssub.s32 2048, 2048
          %995 = vsyncadd %s985, %s994
          %s996 = smul.addr %s992, 128
          %s997 = scalar_lea.hbm %s5, %s996
          %s998 = sshll.u32 %s988, 4
          %s999 = int_to_ptr.vmem [resolvable:$true] %s998
          %1004 = dma.vmem_to_hbm [thread:$0]  %s999, 2048, %s997, %s985, 128, 128, 8
        $region48: #{tpu_custom_call.1} parent=39 // pred_fallthru
          _
      $region40: #{tpu_custom_call.1} parent=5 // pred_fallthru
        _
      %p1005 = scmp.le.s32.totalorder 2, %s17
      // Predicated region
      $region49: #{tpu_custom_call.1} parent=5 // pred_check
        %p1006 = pneg %p1005
      $region50: #{tpu_custom_call.1} parent=5 // pred_check_branch
        %1008 = sbr.rel (%p1006) target = $region52
      $region51: #{tpu_custom_call.1} parent=5 // pred_region
        %s1009 = ssub.s32 %s17, 2
        // Predicated region
        $region53: #{tpu_custom_call.1} parent=51 // pred_check
          %p1010 = pneg %p156
        $region54: #{tpu_custom_call.1} parent=51 // pred_check_branch
          %1012 = sbr.rel (%p1010) target = $region56
        $region55: #{tpu_custom_call.1} parent=51 // pred_region
          %s1013 = sand.u32 %s141, 1
          %s1014 = scalar_lea.sflag [#allocation4], %s1013
          %s1015 = sand.u32 %s141, 1
          %s1016 = smul.addr %s1015, 128
          %s1017 = scalar_lea.vmem [#allocation5], %s1016
          %1018 = dma.done %s1014, 2048
        $region56: #{tpu_custom_call.1} parent=51 // pred_fallthru
          _
      $region52: #{tpu_custom_call.1} parent=5 // pred_fallthru
        _
    $region6: #{tpu_custom_call.1} parent=1 // loop_footer
      %s21 = sadd.s32 1, %s17
    $region7: #{tpu_custom_call.1} parent=1 // loop_footer_branch
      %16 = sbr.rel target = $region3
    $region8: #{tpu_custom_call.1} parent=1 // loop_exit
      _
    %1019 = vsyncpa [#allocation3], 1
    %s1020 = scalar_lea.sflag [#allocation3], 1
    %1021 = vsyncpa %s1020, 1
    %1022 = vsyncpa [#allocation4], 1
    %s1023 = scalar_lea.sflag [#allocation4], 1
    %1024 = vsyncpa %s1023, 1

</llo_original>
